<compile_context>
chip_gen: v5e
topology: v5e:2x2
jax: 0.10.0
libtpu: 0.0.40
codegen_flags: <defaults>
</compile_context>

<pallas_src>
import functools

import jax
import jax.numpy as jnp
import numpy as np
from jax.experimental import pallas as pl
from jax.experimental.pallas import tpu as pltpu

_VMEM_LIMIT = 64 * 1024 * 1024
_LN_EPS = 1e-5


def _pick_tile(n, max_tile=256):
    """Largest tile <= max_tile that divides n (multiple of 8), else n itself."""
    if n <= max_tile:
        return n
    for t in (256, 128, 64, 32, 16, 8):
        if t <= max_tile and n % t == 0:
            return t
    return n


def _layer_norm(x, g, b):
    mu = jnp.mean(x, axis=-1, keepdims=True)
    var = jnp.mean((x - mu) ** 2, axis=-1, keepdims=True)
    return (x - mu) * jax.lax.rsqrt(var + _LN_EPS) * g + b


# ---------------------------------------------------------------------------
# Kernel 1: LN1 + fused QKV projection over row tiles of (B*N, C).
# ---------------------------------------------------------------------------
def _qkv_kernel(x_ref, g1_ref, be1_ref, wqkv_ref, q_ref, kv_ref, *, c):
    x = x_ref[...]                                          # (TR, C) f32
    xn = _layer_norm(x, g1_ref[...], be1_ref[...])
    qkv = jnp.dot(xn.astype(jnp.bfloat16), wqkv_ref[...],   # bf16 x bf16 -> f32 acc
                  preferred_element_type=jnp.float32)        # (TR, 3C)
    q_ref[...] = qkv[:, :c].astype(jnp.bfloat16)            # Q already pre-scaled
    kv_ref[...] = qkv[:, c:].astype(jnp.bfloat16)


# ---------------------------------------------------------------------------
# Kernel 2: attention (batched over heads) + residual + LN2 + MLP + residual,
# tiled over (batch, query tiles); K/V for the whole sequence are resident.
# ---------------------------------------------------------------------------
def _attn_mlp_kernel(x_ref, q_ref, kv_ref, wp_ref, bp_ref, g2_ref, be2_ref,
                     w1_ref, b1_ref, w2_ref, b2_ref, o_ref, *, num_heads):
    x = x_ref[...]                                          # (TQ, C) f32
    tq, c = x.shape
    d = c // num_heads
    n = kv_ref.shape[0]

    q = q_ref[...].reshape(tq, num_heads, d)                # bf16, scale pre-folded
    kv = kv_ref[...]
    k = kv[:, :c].reshape(n, num_heads, d)                  # bf16
    v = kv[:, c:].reshape(n, num_heads, d)                  # bf16

    # Batched-over-heads attention scores: (H, TQ, N) accumulated in f32.
    s = jnp.einsum('qhd,khd->hqk', q, k, preferred_element_type=jnp.float32)
    s = s - jnp.max(s, axis=-1, keepdims=True)
    p = jnp.exp(s)
    p = p * pl.reciprocal(jnp.sum(p, axis=-1, keepdims=True), approx=True)

    att = jnp.einsum('hqk,khd->qhd', p.astype(jnp.bfloat16), v,
                     preferred_element_type=jnp.float32).reshape(tq, c)
    att = jnp.dot(att.astype(jnp.bfloat16), wp_ref[...],
                  preferred_element_type=jnp.float32) + bp_ref[...]
    x = x + att                                              # residual 1 (f32)

    # MLP branch on the query tile.
    xn2 = _layer_norm(x, g2_ref[...], be2_ref[...])
    h1 = jnp.dot(xn2.astype(jnp.bfloat16), w1_ref[...],
                 preferred_element_type=jnp.float32) + b1_ref[...]
    h1 = jnp.maximum(h1, 0.0)
    h2 = jnp.dot(h1.astype(jnp.bfloat16), w2_ref[...],
                 preferred_element_type=jnp.float32) + b2_ref[...]
    o_ref[...] = (x + h2).astype(o_ref.dtype)                # residual 2


# ---------------------------------------------------------------------------
# Per-layer wrapper: two pallas_calls.
# ---------------------------------------------------------------------------
def transformer_layer_pallas(x, p, num_heads):
    B, N, C = x.shape
    Hm = p["w1"].shape[1]
    R = B * N
    TR = _pick_tile(R)        # row tile for the fused QKV projection
    TQ = _pick_tile(N)        # query tile for attention + MLP

    const2 = lambda shape: pl.BlockSpec(shape, lambda *_: (0,) * len(shape))

    # ---- kernel 1: (B*N, C) rows -> Q (bf16), KV (bf16) ----
    x2d = x.reshape(R, C)
    q2d, kv2d = pl.pallas_call(
        functools.partial(_qkv_kernel, c=C),
        out_shape=(jax.ShapeDtypeStruct((R, C), jnp.bfloat16),
                   jax.ShapeDtypeStruct((R, 2 * C), jnp.bfloat16)),
        grid=(R // TR,),
        in_specs=[
            pl.BlockSpec((TR, C), lambda r: (r, 0)),         # x rows
            const2((1, C)), const2((1, C)),                  # norm1 gamma/beta
            const2((C, 3 * C)),                              # fused Wqkv (bf16)
        ],
        out_specs=(pl.BlockSpec((TR, C), lambda r: (r, 0)),
                   pl.BlockSpec((TR, 2 * C), lambda r: (r, 0))),
        compiler_params=pltpu.CompilerParams(
            dimension_semantics=("parallel",),
            vmem_limit_bytes=_VMEM_LIMIT),
    )(x2d, p["g1"], p["be1"], p["wqkv"])
    q = q2d.reshape(B, N, C)
    kv = kv2d.reshape(B, N, 2 * C)

    cw = lambda shape: pl.BlockSpec(shape, lambda b, qi, _s=shape: (0,) * len(_s))

    # ---- kernel 2: attention + MLP over (batch, query-tile) grid ----
    out = pl.pallas_call(
        functools.partial(_attn_mlp_kernel, num_heads=num_heads),
        out_shape=jax.ShapeDtypeStruct((B, N, C), x.dtype),
        grid=(B, N // TQ),
        in_specs=[
            pl.BlockSpec((None, TQ, C), lambda b, qi: (b, qi, 0)),    # x tile
            pl.BlockSpec((None, TQ, C), lambda b, qi: (b, qi, 0)),    # q tile (bf16)
            pl.BlockSpec((None, N, 2 * C), lambda b, qi: (b, 0, 0)),  # full KV (bf16)
            cw((C, C)), cw((1, C)),                                   # Wproj (bf16), bproj
            cw((1, C)), cw((1, C)),                                   # norm2 gamma/beta
            cw((C, Hm)), cw((1, Hm)),                                 # fc1 W (bf16), b
            cw((Hm, C)), cw((1, C)),                                  # fc2 W (bf16), b
        ],
        out_specs=pl.BlockSpec((None, TQ, C), lambda b, qi: (b, qi, 0)),
        compiler_params=pltpu.CompilerParams(
            dimension_semantics=("parallel", "parallel"),
            vmem_limit_bytes=_VMEM_LIMIT),
    )(x, q, kv, p["wp"], p["bp"], p["g2"], p["be2"],
      p["w1"], p["b1"], p["w2"], p["b2"])
    return out


def transformer_forward_pallas(x, packed_params, num_heads):
    for p in packed_params:
        x = transformer_layer_pallas(x, p, num_heads)
    return x


# ---------------- deterministic "PyTorch-like" f32 parameters ----------------
def init_transformer_params(key, dim_self, num_heads, num_layers, mlp_ratio=4.0):
    hdim = int(dim_self * mlp_ratio)
    params = []
    for i in range(num_layers):
        ks = jax.random.split(jax.random.fold_in(key, i), 10)

        def rnd(k, shape, scale=0.05):
            return jax.random.normal(k, shape, jnp.float32) * scale

        params.append(dict(
            g1=1.0 + rnd(ks[8], (1, dim_self), 0.1),
            be1=rnd(ks[9], (1, dim_self), 0.1),
            wq=rnd(ks[0], (dim_self, dim_self)),            # (in, out), bias=False
            wkv=rnd(ks[1], (dim_self, 2 * dim_self)),       # bias=False
            wp=rnd(ks[2], (dim_self, dim_self)),
            bp=rnd(ks[3], (1, dim_self)),
            g2=1.0 + rnd(ks[4], (1, dim_self), 0.1),
            be2=rnd(ks[5], (1, dim_self), 0.1),
            w1=rnd(ks[6], (dim_self, hdim)),
            b1=rnd(ks[7], (1, hdim)),
            w2=rnd(jax.random.fold_in(ks[6], 1), (hdim, dim_self)),
            b2=rnd(jax.random.fold_in(ks[7], 1), (1, dim_self)),
        ))
    return params


def pack_params_for_pallas(params, num_heads):
    """bf16 weights, fused QKV with 1/sqrt(D) folded into the Q columns."""
    packed = []
    for p in params:
        C = p["wq"].shape[0]
        D = C // num_heads
        wq_scaled = p["wq"] * (float(D) ** -0.5)
        wqkv = jnp.concatenate([wq_scaled, p["wkv"]], axis=1).astype(jnp.bfloat16)
        packed.append(dict(
            g1=p["g1"], be1=p["be1"],
            wqkv=wqkv,
            wp=p["wp"].astype(jnp.bfloat16), bp=p["bp"],
            g2=p["g2"], be2=p["be2"],
            w1=p["w1"].astype(jnp.bfloat16), b1=p["b1"],
            w2=p["w2"].astype(jnp.bfloat16), b2=p["b2"],
        ))
    return packed


# ---------------- pure-JAX f32 reference (mirrors PyTorch semantics) ----------------
def _ref_layer(x, p, num_heads):
    B, N, C = x.shape
    D = C // num_heads

    def ln(v, g, b):
        mu = jnp.mean(v, axis=-1, keepdims=True)
        var = jnp.mean((v - mu) ** 2, axis=-1, keepdims=True)
        return (v - mu) / jnp.sqrt(var + _LN_EPS) * g + b

    xn = ln(x, p["g1"], p["be1"])
    q = (xn @ p["wq"]).reshape(B, N, num_heads, D)
    kv = xn @ p["wkv"]
    k = kv[..., :C].reshape(B, N, num_heads, D)
    v = kv[..., C:].reshape(B, N, num_heads, D)
    att = jnp.einsum("bnhd,bmhd->bnmh", q, k) * (D ** -0.5)
    att = jax.nn.softmax(att, axis=2)
    out = jnp.einsum("bnmh,bmhd->bnhd", att, v).reshape(B, N, C)
    x = x + out @ p["wp"] + p["bp"]

    xn2 = ln(x, p["g2"], p["be2"])
    h = jnp.maximum(xn2 @ p["w1"] + p["b1"], 0.0)
    x = x + h @ p["w2"] + p["b2"]
    return x


def transformer_forward_ref(x, params, num_heads):
    for p in params:
        x = _ref_layer(x, p, num_heads)
    return x


if __name__ == "__main__":
    # Transformer(dim_self=32, num_heads=4, num_layers=2), enc_dec=False
    B, N, C, H, L = 2, 8, 32, 4, 2
    key = jax.random.PRNGKey(0)
    kx, kp = jax.random.split(key)
    x = jax.random.normal(kx, (B, N, C), jnp.float32)

    params_f32 = init_transformer_params(kp, C, H, L)
    params_pallas = pack_params_for_pallas(params_f32, H)

    out = transformer_forward_pallas(x, params_pallas, H)
    out = jax.block_until_ready(out)

    ref = transformer_forward_ref(x, params_f32, H)
    # bf16 MXU inputs (f32 accumulation) -> looser tolerance than the pure-f32 version.
    np.testing.assert_allclose(np.asarray(out), np.asarray(ref), rtol=2e-2, atol=2e-2)

    print("KERNEL_OK")
</pallas_src>

<mosaic_0001>
module attributes {stable_mosaic.version = 11 : i64} {
  func.func @_qkv_kernel(%arg0: i32, %arg1: memref<16x32xf32, #tpu.memory_space<vmem>>, %arg2: memref<1x32xf32, #tpu.memory_space<vmem>>, %arg3: memref<1x32xf32, #tpu.memory_space<vmem>>, %arg4: memref<32x96xbf16, #tpu.memory_space<vmem>>, %arg5: memref<16x32xbf16, #tpu.memory_space<vmem>>, %arg6: memref<16x64xbf16, #tpu.memory_space<vmem>>) attributes {dimension_semantics = [#tpu.dimension_semantics<parallel>], iteration_bounds = array<i64: 1>, scalar_prefetch = 0 : i64, scratch_operands = 0 : i64, tpu.core_type = #tpu.core_type<tc>, window_params = [{transform_indices = @transform_0, window_bounds = array<i64: 16, 32>}, {pipeline_mode = #tpu.pipeline_mode<synchronous>, transform_indices = @transform_1, window_bounds = array<i64: 1, 32>}, {pipeline_mode = #tpu.pipeline_mode<synchronous>, transform_indices = @transform_2, window_bounds = array<i64: 1, 32>}, {pipeline_mode = #tpu.pipeline_mode<synchronous>, transform_indices = @transform_3, window_bounds = array<i64: 32, 96>}, {transform_indices = @transform_4, window_bounds = array<i64: 16, 32>}, {transform_indices = @transform_5, window_bounds = array<i64: 16, 64>}]} {
    %c0 = arith.constant 0 : index
    %c0_0 = arith.constant 0 : index
    %0 = vector.load %arg1[%c0, %c0_0] : memref<16x32xf32, #tpu.memory_space<vmem>>, vector<16x32xf32>
    %c0_1 = arith.constant 0 : index
    %c0_2 = arith.constant 0 : index
    %1 = vector.load %arg2[%c0_1, %c0_2] : memref<1x32xf32, #tpu.memory_space<vmem>>, vector<1x32xf32>
    %c0_3 = arith.constant 0 : index
    %c0_4 = arith.constant 0 : index
    %2 = vector.load %arg3[%c0_3, %c0_4] : memref<1x32xf32, #tpu.memory_space<vmem>>, vector<1x32xf32>
    %cst = arith.constant dense<0.000000e+00> : vector<16xf32>
    %3 = vector.multi_reduction <add>, %0, %cst [1] : vector<16x32xf32> to vector<16xf32>
    %4 = vector.shape_cast %3 : vector<16xf32> to vector<16x1xf32>
    %cst_5 = arith.constant 3.200000e+01 : f32
    %5 = vector.broadcast %cst_5 : f32 to vector<16x1xf32>
    %6 = arith.divf %4, %5 : vector<16x1xf32>
    %7 = vector.broadcast %6 : vector<16x1xf32> to vector<16x32xf32>
    %8 = arith.subf %0, %7 : vector<16x32xf32>
    %9 = arith.mulf %8, %8 : vector<16x32xf32>
    %cst_6 = arith.constant dense<0.000000e+00> : vector<16xf32>
    %10 = vector.multi_reduction <add>, %9, %cst_6 [1] : vector<16x32xf32> to vector<16xf32>
    %11 = vector.shape_cast %10 : vector<16xf32> to vector<16x1xf32>
    %cst_7 = arith.constant 3.200000e+01 : f32
    %12 = vector.broadcast %cst_7 : f32 to vector<16x1xf32>
    %13 = arith.divf %11, %12 : vector<16x1xf32>
    %14 = vector.broadcast %6 : vector<16x1xf32> to vector<16x32xf32>
    %15 = arith.subf %0, %14 : vector<16x32xf32>
    %cst_8 = arith.constant 9.99999974E-6 : f32
    %16 = vector.broadcast %cst_8 : f32 to vector<16x1xf32>
    %17 = arith.addf %13, %16 : vector<16x1xf32>
    %18 = math.rsqrt %17 : vector<16x1xf32>
    %19 = vector.broadcast %18 : vector<16x1xf32> to vector<16x32xf32>
    %20 = arith.mulf %15, %19 : vector<16x32xf32>
    %21 = vector.broadcast %1 : vector<1x32xf32> to vector<16x32xf32>
    %22 = arith.mulf %20, %21 : vector<16x32xf32>
    %23 = vector.broadcast %2 : vector<1x32xf32> to vector<16x32xf32>
    %24 = arith.addf %22, %23 : vector<16x32xf32>
    %25 = arith.truncf %24 : vector<16x32xf32> to vector<16x32xbf16>
    %c0_9 = arith.constant 0 : index
    %c0_10 = arith.constant 0 : index
    %26 = vector.load %arg4[%c0_9, %c0_10] : memref<32x96xbf16, #tpu.memory_space<vmem>>, vector<32x96xbf16>
    %cst_11 = arith.constant dense<0.000000e+00> : vector<16x96xf32>
    %27 = tpu.matmul %25, %26, %cst_11 {dimension_numbers = #tpu.dot_dimension_numbers<[1], [0], [0], [1], [0, 0, 1, 1], [], []>} : vector<16x32xbf16>, vector<32x96xbf16>, vector<16x96xf32> -> vector<16x96xf32>
    %28 = vector.extract_strided_slice %27 {offsets = [0, 0], sizes = [16, 32], strides = [1, 1]} : vector<16x96xf32> to vector<16x32xf32>
    %29 = arith.truncf %28 : vector<16x32xf32> to vector<16x32xbf16>
    %c0_12 = arith.constant 0 : index
    %c0_13 = arith.constant 0 : index
    %30 = vector.load %arg5[%c0_12, %c0_13] : memref<16x32xbf16, #tpu.memory_space<vmem>>, vector<16x32xbf16>
    tpu.vector_store %arg5[%c0_12, %c0_13], %29 {strides = array<i32>} : memref<16x32xbf16, #tpu.memory_space<vmem>>, vector<16x32xbf16>,
    %31 = vector.extract_strided_slice %27 {offsets = [0, 32], sizes = [16, 64], strides = [1, 1]} : vector<16x96xf32> to vector<16x64xf32>
    %32 = arith.truncf %31 : vector<16x64xf32> to vector<16x64xbf16>
    %c0_14 = arith.constant 0 : index
    %c0_15 = arith.constant 0 : index
    %33 = vector.load %arg6[%c0_14, %c0_15] : memref<16x64xbf16, #tpu.memory_space<vmem>>, vector<16x64xbf16>
    tpu.vector_store %arg6[%c0_14, %c0_15], %32 {strides = array<i32>} : memref<16x64xbf16, #tpu.memory_space<vmem>>, vector<16x64xbf16>,
    return
  }
  func.func @transform_0(%arg0: i32) -> (i32, i32) {
    %c0_i32 = arith.constant 0 : i32
    %c0_i32_0 = arith.constant 0 : i32
    return %arg0, %c0_i32 : i32, i32
  }
  func.func @transform_1(%arg0: i32) -> (i32, i32) {
    %c0_i32 = arith.constant 0 : i32
    %c0_i32_0 = arith.constant 0 : i32
    %c0_i32_1 = arith.constant 0 : i32
    return %c0_i32, %c0_i32_0 : i32, i32
  }
  func.func @transform_2(%arg0: i32) -> (i32, i32) {
    %c0_i32 = arith.constant 0 : i32
    %c0_i32_0 = arith.constant 0 : i32
    %c0_i32_1 = arith.constant 0 : i32
    return %c0_i32, %c0_i32_0 : i32, i32
  }
  func.func @transform_3(%arg0: i32) -> (i32, i32) {
    %c0_i32 = arith.constant 0 : i32
    %c0_i32_0 = arith.constant 0 : i32
    %c0_i32_1 = arith.constant 0 : i32
    return %c0_i32, %c0_i32_0 : i32, i32
  }
  func.func @transform_4(%arg0: i32) -> (i32, i32) {
    %c0_i32 = arith.constant 0 : i32
    %c0_i32_0 = arith.constant 0 : i32
    return %arg0, %c0_i32 : i32, i32
  }
  func.func @transform_5(%arg0: i32) -> (i32, i32) {
    %c0_i32 = arith.constant 0 : i32
    %c0_i32_0 = arith.constant 0 : i32
    return %arg0, %c0_i32 : i32, i32
  }
}

</mosaic_0001>

<llo_original>
// kernel: tpu_custom_call.1
$region0: #{tpu_custom_call.1}
  #allocation0 [shape = 'u32[]', space=smem, size = 0x4, offset = 0x4, fixed_abs, tag = 'smem constant byte address 0x4 - core index']
  #allocation1 [shape = 'u32[72,128]{1,0:T(1,128)}', space=vmem, size = 0x9000, scoped, tag = 'internal scratch']
  %s0 = inlined_call_operand.hbm [shape: f32[16,32], index: 0, kind: input, shape index: {}]
  %s1 = inlined_call_operand.hbm [shape: f32[1,32], index: 1, kind: input, shape index: {}]
  %s2 = inlined_call_operand.vmem [shape: f32[1,32], index: 2, kind: input, shape index: {}]
  %s3 = inlined_call_operand.hbm [shape: bf16[32,96], index: 3, kind: input, shape index: {}]
  %s4 = inlined_call_operand.hbm [shape: bf16[16,32], index: 4, kind: output, shape index: {0}]
  %s5 = inlined_call_operand.hbm [shape: bf16[16,64], index: 5, kind: output, shape index: {1}]
  %6 = xla_tuple %s4, %s5
  %s7 = sld [smem:[#allocation0]]
  $region46: #{tpu_custom_call.1} parent=0
    _
  %s9 = ssub.s32 1, %s7
  %s10 = scalar_select 0, %s9, %s7
  $region1: #{tpu_custom_call.1} parent=0
    #allocation2 [shape = 'u8[8192]{0}', space=vmem, size = 0x2000, scoped, tag = 'input window, operand 0, single buffered']
    #allocation3 [shape = 's32[1]{0}', space=sflag, size = 0x4, scoped, tag = 'scoped memory for tpu_custom_call.1']
    #allocation4 [shape = 's32[1]{0}', space=sflag, size = 0x4, scoped, tag = 'scoped memory for tpu_custom_call.1']
    #allocation5 [shape = 'u8[512]{0}', space=vmem, size = 0x400, scoped, tag = 'input window, operand 1, single buffered']
    #allocation6 [shape = 's32[1]{0}', space=sflag, size = 0x4, scoped, tag = 'scoped memory for tpu_custom_call.1']
    #allocation7 [shape = 'u8[8192]{0}', space=vmem, size = 0x2000, scoped, tag = 'input window, operand 3, single buffered']
    #allocation8 [shape = 'u8[4096]{0}', space=vmem, size = 0x1000, scoped, tag = 'output window, operand 0, single buffered']
    #allocation9 [shape = 'u8[4096]{0}', space=vmem, size = 0x1000, scoped, tag = 'output window, operand 1, single buffered']
    #allocation10 [shape = 's32[1]{0}', space=sflag, size = 0x4, scoped, tag = 'scoped memory for tpu_custom_call.1']
    %11 = vsyncpa [#allocation3], 0
    %12 = vsyncpa [#allocation6], 0
    %13 = vsyncpa [#allocation4], 0
    %14 = vsyncpa [#allocation10], 0
    // Predicated region
    $region2: #{tpu_custom_call.1} parent=1 // pred_check
      _
    $region3: #{tpu_custom_call.1} parent=1 // pred_check_branch
      %16 = sbr.rel (0) target = $region5
    $region4: #{tpu_custom_call.1} parent=1 // pred_region
      %18 = vsyncadd [#allocation3], 0
      %s19 = sshll.u32 %s0, 4
      %s20 = int_to_ptr.hbm [resolvable:$true] %s19
      %s21 = sshll.u32 [#allocation2], 4
      %s22 = int_to_ptr.vmem [resolvable:$true] %s21
      %27 = dma.hbm_to_vmem [thread:$0]  %s20, 256, %s22, [#allocation3], 128, 128, 8
    $region5: #{tpu_custom_call.1} parent=1 // pred_fallthru
      _
    // Predicated region
    $region6: #{tpu_custom_call.1} parent=1 // pred_check
      _
    $region7: #{tpu_custom_call.1} parent=1 // pred_check_branch
      %29 = sbr.rel (0) target = $region9
    $region8: #{tpu_custom_call.1} parent=1 // pred_region
      %31 = vsyncadd [#allocation6], 0
      %s33 = sshll.u32 %s1, 4
      %s34 = int_to_ptr.hbm [resolvable:$true] %s33
      %s35 = sshll.u32 [#allocation5], 4
      %s36 = int_to_ptr.vmem [resolvable:$true] %s35
      %38 = dma.hbm_to_vmem [thread:$0]  %s34, 16, %s36, [#allocation6]
    $region9: #{tpu_custom_call.1} parent=1 // pred_fallthru
      _
    // Predicated region
    $region10: #{tpu_custom_call.1} parent=1 // pred_check
      _
    $region11: #{tpu_custom_call.1} parent=1 // pred_check_branch
      %40 = sbr.rel (0) target = $region13
    $region12: #{tpu_custom_call.1} parent=1 // pred_region
      _
    $region13: #{tpu_custom_call.1} parent=1 // pred_fallthru
      _
    // Predicated region
    $region14: #{tpu_custom_call.1} parent=1 // pred_check
      _
    $region15: #{tpu_custom_call.1} parent=1 // pred_check_branch
      %42 = sbr.rel (0) target = $region17
    $region16: #{tpu_custom_call.1} parent=1 // pred_region
      %44 = vsyncadd [#allocation6], 0
      %s45 = sshll.u32 %s3, 4
      %s46 = int_to_ptr.hbm [resolvable:$true] %s45
      %s47 = sshll.u32 [#allocation7], 4
      %s48 = int_to_ptr.vmem [resolvable:$true] %s47
      %53 = dma.hbm_to_vmem [thread:$0]  %s46, 256, %s48, [#allocation6], 64, 64, 4
    $region17: #{tpu_custom_call.1} parent=1 // pred_fallthru
      _
    // Predicated region
    $region18: #{tpu_custom_call.1} parent=1 // pred_check
      _
    $region19: #{tpu_custom_call.1} parent=1 // pred_check_branch
      %55 = sbr.rel (0) target = $region21
    $region20: #{tpu_custom_call.1} parent=1 // pred_region
      %57 = dma.done [#allocation3], 256
    $region21: #{tpu_custom_call.1} parent=1 // pred_fallthru
      _
    // Predicated region
    $region22: #{tpu_custom_call.1} parent=1 // pred_check
      _
    $region23: #{tpu_custom_call.1} parent=1 // pred_check_branch
      %59 = sbr.rel (0) target = $region25
    $region24: #{tpu_custom_call.1} parent=1 // pred_region
      %61 = dma.done [#allocation6], 16
    $region25: #{tpu_custom_call.1} parent=1 // pred_fallthru
      _
    // Predicated region
    $region26: #{tpu_custom_call.1} parent=1 // pred_check
      _
    $region27: #{tpu_custom_call.1} parent=1 // pred_check_branch
      %63 = sbr.rel (0) target = $region29
    $region28: #{tpu_custom_call.1} parent=1 // pred_region
      %65 = dma.done [#allocation6], 256
    $region29: #{tpu_custom_call.1} parent=1 // pred_fallthru
      _
    %v67 = vld [vmem:[#allocation2] sm:$0xff]
    %v68 = vld [vmem:[#allocation2 + $0x8] sm:$0xff]
    %v69 = vld [vmem:[#allocation5] sm:$0x1]
    %v70 = vld [vmem:[%s2] sm:$0x1]
    %vm71 = vcmask 261120
    %v72 = vsel %vm71, %v67, 0.0
    %73 = vadd.xlane.f32.xlu0 %v72
    %v74 = vpop.xlane.xlu0 %73
    %v75 = vsel %vm71, %v68, 0.0
    %76 = vadd.xlane.f32.xlu0 %v75
    %v77 = vpop.xlane.xlu0 %76
    %v78 = vrcp.pop 32.0
    %v79 = vmul.f32 32.0, %v78
    %v80 = vsub.f32 1.0, %v79
    %v81 = vmul.f32 %v78, %v80
    %v82 = vadd.f32 %v78, %v81
    %vm83 = vweird.f32 %v78
    %v84 = vsel %vm83, %v78, %v82
    %v85 = vmul.f32 %v74, %v84
    %v86 = vmul.f32 %v77, %v84
    %v87 = vsub.f32 %v67, %v85
    %v88 = vsub.f32 %v68, %v86
    %v89 = vmul.f32 %v87, %v87
    %v90 = vmul.f32 %v88, %v88
    %v91 = vsel %vm71, %v89, 0.0
    %92 = vadd.xlane.f32.xlu0 %v91
    %v93 = vpop.xlane.xlu0 %92
    %v94 = vsel %vm71, %v90, 0.0
    %95 = vadd.xlane.f32.xlu0 %v94
    %v96 = vpop.xlane.xlu0 %95
    %v97 = vmul.f32 %v93, %v84
    %v98 = vmul.f32 %v96, %v84
    %v99 = vadd.f32 %v97, 1e-05
    %v100 = vadd.f32 %v98, 1e-05
    %v101 = vrsqrt.pop %v99
    %v102 = vmul.f32 %v101, %v99
    %v103 = vmul.f32 %v102, %v101
    %v104 = vmul.f32 0.5, %v103
    %v105 = vsub.f32 1.5, %v104
    %v106 = vmul.f32 %v101, %v105
    %vm107 = vweird.f32 %v99
    %vm108 = vweird.f32 %v101
    %vm109 = vmor %vm107, %vm108
    %v110 = vsel %vm109, %v101, %v106
    %v111 = vrsqrt.pop %v100
    %v112 = vmul.f32 %v111, %v100
    %v113 = vmul.f32 %v112, %v111
    %v114 = vmul.f32 0.5, %v113
    %v115 = vsub.f32 1.5, %v114
    %v116 = vmul.f32 %v111, %v115
    %vm117 = vweird.f32 %v100
    %vm118 = vweird.f32 %v111
    %vm119 = vmor %vm117, %vm118
    %v120 = vsel %vm119, %v111, %v116
    %v121 = vmul.f32 %v87, %v110
    %v122 = vmul.f32 %v88, %v120
    %v124 = vperm.slane %v69, 0
    %v126 = vmul.f32 %v121, %v124
    %v127 = vmul.f32 %v122, %v124
    %v129 = vperm.slane %v70, 0
    %v131 = vadd.f32 %v126, %v129
    %v132 = vadd.f32 %v127, %v129
    %v133 = vpack.c.bf16 %v132, %v131
    %v134 = vld [vmem:[#allocation7] sm:$0xf]
    %v135 = vld [vmem:[#allocation7 + $0x4] sm:$0xf]
    %v136 = vld [vmem:[#allocation7 + $0x8] sm:$0xf]
    %v137 = vld [vmem:[#allocation7 + $0xc] sm:$0xf]
    %v142 = vunpack.c.l.b16 %v134
    %v143 = vunpack.c.l.b16 %v135
    %v144 = vunpack.c.l.b16 %v136
    %v145 = vunpack.c.l.b16 %v137
    %v146 = vpack.c.b16 %v143, %v142
    %v147 = vpack.c.b16 %v145, %v144
    %v151 = vsel %vm71, %v133, 0
    %153 = vmatpush.bf16.msra.mxu0 0
    %154 = vmatpush.bf16.msra.mxu0 0
    %155 = vmatpush.bf16.msra.mxu0 0
    %156 = vmatpush.bf16.msra.mxu0 0
    %157 = vmatpush.bf16.msra.mxu0 0
    %158 = vmatpush.bf16.msra.mxu0 0
    %159 = vmatpush.bf16.msra.mxu0 %v147
    %160 = vmatpush.bf16.msra.mxu0 %v146
    %161 = vmatmul.bf16.gmra.mxu0 %v151
    %v162 = vpop.f32.mrf.mxu0
    %v163 = vadd.f32 0.0, %v162
    %v164 = vpop.f32.mrf.mxu0
    %v165 = vadd.f32 0.0, %v164
    %166 = vdwg.mxu0
    %v167 = vpack.c.bf16 %v163, %v163
    %v168 = vpack.c.bf16 %v165, %v165
    %vm169 = vcmask 257024
    %170 = vst.msk [vmem:[#allocation8] sm:$0xf] %vm169, %v167
    %171 = vst.msk [vmem:[#allocation8 + $0x4] sm:$0xf] %vm169, %v168
    %174 = vrot.lane.b32.xlu0 %v167, 96
    %v175 = vpop.permute.xlu0 %174
    %176 = vrot.lane.b32.xlu0 %v168, 96
    %v177 = vpop.permute.xlu0 %176
    %vm180 = vcmask 519168
    %181 = vst.msk [vmem:[#allocation9] sm:$0xf] %vm180, %v175
    %182 = vst.msk [vmem:[#allocation9 + $0x4] sm:$0xf] %vm180, %v177
    // Predicated region
    $region30: #{tpu_custom_call.1} parent=1 // pred_check
      _
    $region31: #{tpu_custom_call.1} parent=1 // pred_check_branch
      %184 = sbr.rel (0) target = $region33
    $region32: #{tpu_custom_call.1} parent=1 // pred_region
      %186 = vsyncadd [#allocation4], 0
      %s187 = sshll.u32 [#allocation8], 4
      %s188 = int_to_ptr.vmem [resolvable:$true] %s187
      %s189 = sshll.u32 %s4, 4
      %s190 = int_to_ptr.hbm [resolvable:$true] %s189
      %195 = dma.vmem_to_hbm [thread:$0]  %s188, 128, %s190, [#allocation4], 64, 64, 4
    $region33: #{tpu_custom_call.1} parent=1 // pred_fallthru
      _
    // Predicated region
    $region34: #{tpu_custom_call.1} parent=1 // pred_check
      _
    $region35: #{tpu_custom_call.1} parent=1 // pred_check_branch
      %197 = sbr.rel (0) target = $region37
    $region36: #{tpu_custom_call.1} parent=1 // pred_region
      %199 = vsyncadd [#allocation10], 0
      %s200 = sshll.u32 [#allocation9], 4
      %s201 = int_to_ptr.vmem [resolvable:$true] %s200
      %s202 = sshll.u32 %s5, 4
      %s203 = int_to_ptr.hbm [resolvable:$true] %s202
      %208 = dma.vmem_to_hbm [thread:$0]  %s201, 128, %s203, [#allocation10], 64, 64, 4
    $region37: #{tpu_custom_call.1} parent=1 // pred_fallthru
      _
    // Predicated region
    $region38: #{tpu_custom_call.1} parent=1 // pred_check
      _
    $region39: #{tpu_custom_call.1} parent=1 // pred_check_branch
      %210 = sbr.rel (0) target = $region41
    $region40: #{tpu_custom_call.1} parent=1 // pred_region
      %212 = dma.done [#allocation4], 128
    $region41: #{tpu_custom_call.1} parent=1 // pred_fallthru
      _
    // Predicated region
    $region42: #{tpu_custom_call.1} parent=1 // pred_check
      _
    $region43: #{tpu_custom_call.1} parent=1 // pred_check_branch
      %214 = sbr.rel (0) target = $region45
    $region44: #{tpu_custom_call.1} parent=1 // pred_region
      %216 = dma.done [#allocation10], 128
    $region45: #{tpu_custom_call.1} parent=1 // pred_fallthru
      _
    %217 = vsyncpa [#allocation3], 1
    %218 = vsyncpa [#allocation6], 1
    %219 = vsyncpa [#allocation4], 1
    %220 = vsyncpa [#allocation10], 1

</llo_original>
